<compile_context>
chip_gen: v7x
topology: tpu7x:2x2x1
jax: 0.10.0
libtpu: 0.0.40
codegen_flags: <defaults>
</compile_context>

<pallas_src>
import functools

import jax
import jax.numpy as jnp
from jax.experimental import pallas as pl
from jax.experimental.pallas import tpu as pltpu


# ----------------------------------------------------------------------------
# Helpers
# ----------------------------------------------------------------------------
def _round_up(x, m):
    return (x + m - 1) // m * m


def _choose_row_tile(n_rows, in_dim, out_dim, max_tile=2048,
                     vmem_budget_bytes=8 * 1024 * 1024):
    """Largest sublane-aligned row tile that keeps double-buffered
    (input + output) tiles comfortably inside the VMEM budget."""
    bytes_per_row = (in_dim + out_dim) * 4          # f32
    cap_rows = max(8, vmem_budget_bytes // (2 * bytes_per_row))
    cap_rows = max(8, (cap_rows // 8) * 8)          # multiple of 8
    tile = min(max_tile, cap_rows, _round_up(max(n_rows, 1), 8))
    return max(8, tile)


# ----------------------------------------------------------------------------
# Kernels
# ----------------------------------------------------------------------------
def _node_kernel(x_ref, w_ref, b_ref, origin_ref, dest_ref, o_ref, *,
                 n_per_graph):
    """One grid step == one row tile spanning (parts of) many graphs.

    x_ref      : (TILE, node_dim)
    w_ref      : (node_dim, embed_dim)
    b_ref      : (1, embed_dim)
    origin_ref : (1, embed_dim)
    dest_ref   : (1, embed_dim)
    o_ref      : (TILE, embed_dim)
    """
    tile_m = x_ref.shape[0]
    row0 = pl.program_id(0) * tile_m
    # Global row index of every row in this tile (2D iota for TPU).
    rows = row0 + jax.lax.broadcasted_iota(jnp.int32, (tile_m, 1), 0)
    pos = rows % n_per_graph                        # position within its graph

    # Fold bias + origin + destination into a single additive term.
    add = (
        b_ref[...]
        + jnp.where(pos == 0, origin_ref[...], 0.0)
        + jnp.where(pos == n_per_graph - 1, dest_ref[...], 0.0)
    )

    emb = (
        jnp.dot(x_ref[...], w_ref[...], preferred_element_type=jnp.float32)
        + add
    )
    o_ref[...] = emb.astype(o_ref.dtype)


def _edge_kernel(x_ref, w_ref, b_ref, o_ref):
    """Plain linear layer on a (large) tile of edge rows."""
    o_ref[...] = (
        jnp.dot(x_ref[...], w_ref[...], preferred_element_type=jnp.float32)
        + b_ref[...]
    ).astype(o_ref.dtype)


# ----------------------------------------------------------------------------
# Wrapper
# ----------------------------------------------------------------------------
def sosd_init_embedding(nf, ef, params, num_graphs):
    """Pallas implementation of SOSDInitEmbedding.forward."""
    N, node_dim = nf.shape
    E, edge_dim = ef.shape
    embed_dim = params["node_w_t"].shape[1]
    assert N % num_graphs == 0
    n = N // num_graphs

    # ---------------- node path: big row tiles, global-index masks ----------
    tile_n = _choose_row_tile(N, node_dim, embed_dim)
    N_pad = _round_up(N, tile_n)
    nf_p = jnp.pad(nf, ((0, N_pad - N), (0, 0))) if N_pad != N else nf

    node_out = pl.pallas_call(
        functools.partial(_node_kernel, n_per_graph=n),
        out_shape=jax.ShapeDtypeStruct((N_pad, embed_dim), jnp.float32),
        grid=(N_pad // tile_n,),
        in_specs=[
            pl.BlockSpec((tile_n, node_dim), lambda i: (i, 0)),
            pl.BlockSpec((node_dim, embed_dim), lambda i: (0, 0)),
            pl.BlockSpec((1, embed_dim), lambda i: (0, 0)),
            pl.BlockSpec((1, embed_dim), lambda i: (0, 0)),
            pl.BlockSpec((1, embed_dim), lambda i: (0, 0)),
        ],
        out_specs=pl.BlockSpec((tile_n, embed_dim), lambda i: (i, 0)),
        compiler_params=pltpu.CompilerParams(
            dimension_semantics=("parallel",)
        ),
    )(
        nf_p,
        params["node_w_t"],
        params["node_b"],
        params["origin_emb"],
        params["destination_emb"],
    )
    if N_pad != N:
        node_out = node_out[:N]

    # ---------------- edge path: big row tiles ------------------------------
    tile_e = _choose_row_tile(E, edge_dim, embed_dim)
    E_pad = _round_up(E, tile_e)
    ef_p = jnp.pad(ef, ((0, E_pad - E), (0, 0))) if E_pad != E else ef

    edge_out = pl.pallas_call(
        _edge_kernel,
        out_shape=jax.ShapeDtypeStruct((E_pad, embed_dim), jnp.float32),
        grid=(E_pad // tile_e,),
        in_specs=[
            pl.BlockSpec((tile_e, edge_dim), lambda i: (i, 0)),
            pl.BlockSpec((edge_dim, embed_dim), lambda i: (0, 0)),
            pl.BlockSpec((1, embed_dim), lambda i: (0, 0)),
        ],
        out_specs=pl.BlockSpec((tile_e, embed_dim), lambda i: (i, 0)),
        compiler_params=pltpu.CompilerParams(
            dimension_semantics=("parallel",)
        ),
    )(ef_p, params["edge_w_t"], params["edge_b"])
    if E_pad != E:
        edge_out = edge_out[:E]

    return node_out, edge_out


# ----------------------------------------------------------------------------
# Parameters / reference
# ----------------------------------------------------------------------------
def init_params(key, node_dim, edge_dim, embed_dim):
    """Deterministic synthetic parameters (shapes match the PyTorch module)."""
    k = jax.random.split(key, 6)
    node_w = jax.random.normal(k[0], (embed_dim, node_dim), jnp.float32) * 0.1
    node_b = jax.random.normal(k[1], (embed_dim,), jnp.float32) * 0.1
    edge_w = jax.random.normal(k[2], (embed_dim, edge_dim), jnp.float32) * 0.1
    edge_b = jax.random.normal(k[3], (embed_dim,), jnp.float32) * 0.1
    origin = jax.random.normal(k[4], (embed_dim,), jnp.float32)
    dest = jax.random.normal(k[5], (embed_dim,), jnp.float32)
    return {
        "node_w_t": node_w.T,              # [node_dim, embed_dim]
        "node_b": node_b[None, :],         # [1, embed_dim]
        "edge_w_t": edge_w.T,              # [edge_dim, embed_dim]
        "edge_b": edge_b[None, :],         # [1, embed_dim]
        "origin_emb": origin[None, :],     # [1, embed_dim]
        "destination_emb": dest[None, :],  # [1, embed_dim]
    }


def reference(nf, ef, params, num_graphs):
    """Plain-JAX reference mirroring the PyTorch forward."""
    node_emb = nf @ params["node_w_t"] + params["node_b"]
    edge_emb = ef @ params["edge_w_t"] + params["edge_b"]
    N = nf.shape[0]
    n = N // num_graphs
    rows = jnp.arange(N)[:, None]
    node_emb = node_emb + jnp.where(rows % n == 0, params["origin_emb"], 0.0)
    node_emb = node_emb + jnp.where(
        rows % n == n - 1, params["destination_emb"], 0.0
    )
    return node_emb, edge_emb


if __name__ == "__main__":
    # Small synthetic "Batch": num_graphs=2, 12 nodes/graph, 13 edges/graph.
    # (12 / 13 deliberately not multiples of 8 to exercise padded tails.)
    node_dim, edge_dim, embed_dim = 4, 6, 32
    num_graphs, n_per_graph, e_per_graph = 2, 12, 13
    N = num_graphs * n_per_graph   # 24 nodes total
    E = num_graphs * e_per_graph   # 26 edges total

    key = jax.random.PRNGKey(0)
    k_nf, k_ef, k_par = jax.random.split(key, 3)
    nf = jax.random.normal(k_nf, (N, node_dim), jnp.float32)
    ef = jax.random.normal(k_ef, (E, edge_dim), jnp.float32)
    params = init_params(k_par, node_dim, edge_dim, embed_dim)

    node_out, edge_out = sosd_init_embedding(nf, ef, params, num_graphs)
    jax.block_until_ready((node_out, edge_out))

    node_ref, edge_ref = reference(nf, ef, params, num_graphs)
    assert node_out.shape == node_ref.shape and edge_out.shape == edge_ref.shape
    assert jnp.allclose(node_out, node_ref, atol=1e-5, rtol=1e-5)
    assert jnp.allclose(edge_out, edge_ref, atol=1e-5, rtol=1e-5)

    print("KERNEL_OK")
</pallas_src>

<mosaic_0001>
module attributes {stable_mosaic.version = 11 : i64} {
  func.func @_node_kernel(%arg0: i32, %arg1: memref<24x4xf32, #tpu.memory_space<vmem>>, %arg2: memref<4x32xf32, #tpu.memory_space<vmem>>, %arg3: memref<1x32xf32, #tpu.memory_space<vmem>>, %arg4: memref<1x32xf32, #tpu.memory_space<vmem>>, %arg5: memref<1x32xf32, #tpu.memory_space<vmem>>, %arg6: memref<24x32xf32, #tpu.memory_space<vmem>>) attributes {dimension_semantics = [#tpu.dimension_semantics<parallel>], iteration_bounds = array<i64: 1>, scalar_prefetch = 0 : i64, scratch_operands = 0 : i64, tpu.core_type = #tpu.core_type<tc>, window_params = [{transform_indices = @transform_0, window_bounds = array<i64: 24, 4>}, {pipeline_mode = #tpu.pipeline_mode<synchronous>, transform_indices = @transform_1, window_bounds = array<i64: 4, 32>}, {pipeline_mode = #tpu.pipeline_mode<synchronous>, transform_indices = @transform_2, window_bounds = array<i64: 1, 32>}, {pipeline_mode = #tpu.pipeline_mode<synchronous>, transform_indices = @transform_3, window_bounds = array<i64: 1, 32>}, {pipeline_mode = #tpu.pipeline_mode<synchronous>, transform_indices = @transform_4, window_bounds = array<i64: 1, 32>}, {transform_indices = @transform_5, window_bounds = array<i64: 24, 32>}]} {
    %c24_i32 = arith.constant 24 : i32
    %0 = arith.muli %arg0, %c24_i32 : i32
    %1 = tpu.iota {dimensions = array<i32: 0>} : vector<24x1xi32>
    %2 = vector.broadcast %0 : i32 to vector<24x1xi32>
    %3 = arith.addi %2, %1 : vector<24x1xi32>
    %c12_i32 = arith.constant 12 : i32
    %c0_i32 = arith.constant 0 : i32
    %4 = arith.cmpi eq, %c12_i32, %c0_i32 : i32
    %c1_i32 = arith.constant 1 : i32
    %5 = arith.select %4, %c1_i32, %c12_i32 : i32
    %6 = vector.broadcast %5 : i32 to vector<24x1xi32>
    %7 = arith.remsi %3, %6 : vector<24x1xi32>
    %c0_i32_0 = arith.constant 0 : i32
    %8 = vector.broadcast %c0_i32_0 : i32 to vector<24x1xi32>
    %9 = arith.cmpi ne, %7, %8 : vector<24x1xi32>
    %c0_i32_1 = arith.constant 0 : i32
    %10 = vector.broadcast %c0_i32_1 : i32 to vector<24x1xi32>
    %11 = arith.cmpi slt, %7, %10 : vector<24x1xi32>
    %c0_i32_2 = arith.constant 0 : i32
    %12 = arith.cmpi slt, %5, %c0_i32_2 : i32
    %13 = vector.broadcast %12 : i1 to vector<24x1xi1>
    %14 = vector.broadcast %13 : vector<24x1xi1> to vector<24x1xi1>
    %15 = arith.xori %11, %14 : vector<24x1xi1>
    %16 = arith.andi %15, %9 : vector<24x1xi1>
    %17 = vector.broadcast %5 : i32 to vector<24x1xi32>
    %18 = arith.addi %7, %17 : vector<24x1xi32>
    %19 = arith.select %16, %18, %7 : vector<24x1xi1>, vector<24x1xi32>
    %c0 = arith.constant 0 : index
    %c0_3 = arith.constant 0 : index
    %20 = vector.load %arg3[%c0, %c0_3] : memref<1x32xf32, #tpu.memory_space<vmem>>, vector<1x32xf32>
    %c0_i32_4 = arith.constant 0 : i32
    %21 = vector.broadcast %c0_i32_4 : i32 to vector<24x1xi32>
    %22 = arith.cmpi eq, %19, %21 : vector<24x1xi32>
    %c0_5 = arith.constant 0 : index
    %c0_6 = arith.constant 0 : index
    %23 = vector.load %arg4[%c0_5, %c0_6] : memref<1x32xf32, #tpu.memory_space<vmem>>, vector<1x32xf32>
    %cst = arith.constant 0.000000e+00 : f32
    %24 = vector.shape_cast %22 : vector<24x1xi1> to vector<24x1xi1>
    %25 = vector.broadcast %24 : vector<24x1xi1> to vector<24x32xi1>
    %26 = vector.shape_cast %23 : vector<1x32xf32> to vector<1x32xf32>
    %27 = vector.broadcast %26 : vector<1x32xf32> to vector<24x32xf32>
    %28 = vector.broadcast %cst : f32 to vector<24x32xf32>
    %29 = arith.select %25, %27, %28 : vector<24x32xi1>, vector<24x32xf32>
    %30 = vector.broadcast %20 : vector<1x32xf32> to vector<24x32xf32>
    %31 = arith.addf %30, %29 : vector<24x32xf32>
    %c11_i32 = arith.constant 11 : i32
    %32 = vector.broadcast %c11_i32 : i32 to vector<24x1xi32>
    %33 = arith.cmpi eq, %19, %32 : vector<24x1xi32>
    %c0_7 = arith.constant 0 : index
    %c0_8 = arith.constant 0 : index
    %34 = vector.load %arg5[%c0_7, %c0_8] : memref<1x32xf32, #tpu.memory_space<vmem>>, vector<1x32xf32>
    %cst_9 = arith.constant 0.000000e+00 : f32
    %35 = vector.shape_cast %33 : vector<24x1xi1> to vector<24x1xi1>
    %36 = vector.broadcast %35 : vector<24x1xi1> to vector<24x32xi1>
    %37 = vector.shape_cast %34 : vector<1x32xf32> to vector<1x32xf32>
    %38 = vector.broadcast %37 : vector<1x32xf32> to vector<24x32xf32>
    %39 = vector.broadcast %cst_9 : f32 to vector<24x32xf32>
    %40 = arith.select %36, %38, %39 : vector<24x32xi1>, vector<24x32xf32>
    %41 = arith.addf %31, %40 : vector<24x32xf32>
    %c0_10 = arith.constant 0 : index
    %c0_11 = arith.constant 0 : index
    %42 = vector.load %arg1[%c0_10, %c0_11] : memref<24x4xf32, #tpu.memory_space<vmem>>, vector<24x4xf32>
    %c0_12 = arith.constant 0 : index
    %c0_13 = arith.constant 0 : index
    %43 = vector.load %arg2[%c0_12, %c0_13] : memref<4x32xf32, #tpu.memory_space<vmem>>, vector<4x32xf32>
    %cst_14 = arith.constant dense<0.000000e+00> : vector<24x32xf32>
    %44 = tpu.matmul %42, %43, %cst_14 {dimension_numbers = #tpu.dot_dimension_numbers<[1], [0], [0], [1], [0, 0, 1, 1], [], []>} : vector<24x4xf32>, vector<4x32xf32>, vector<24x32xf32> -> vector<24x32xf32>
    %45 = arith.addf %44, %41 : vector<24x32xf32>
    %c0_15 = arith.constant 0 : index
    %c0_16 = arith.constant 0 : index
    %46 = vector.load %arg6[%c0_15, %c0_16] : memref<24x32xf32, #tpu.memory_space<vmem>>, vector<24x32xf32>
    tpu.vector_store %arg6[%c0_15, %c0_16], %45 {strides = array<i32>} : memref<24x32xf32, #tpu.memory_space<vmem>>, vector<24x32xf32>,
    return
  }
  func.func @transform_0(%arg0: i32) -> (i32, i32) {
    %c0_i32 = arith.constant 0 : i32
    %c0_i32_0 = arith.constant 0 : i32
    return %arg0, %c0_i32 : i32, i32
  }
  func.func @transform_1(%arg0: i32) -> (i32, i32) {
    %c0_i32 = arith.constant 0 : i32
    %c0_i32_0 = arith.constant 0 : i32
    %c0_i32_1 = arith.constant 0 : i32
    return %c0_i32, %c0_i32_0 : i32, i32
  }
  func.func @transform_2(%arg0: i32) -> (i32, i32) {
    %c0_i32 = arith.constant 0 : i32
    %c0_i32_0 = arith.constant 0 : i32
    %c0_i32_1 = arith.constant 0 : i32
    return %c0_i32, %c0_i32_0 : i32, i32
  }
  func.func @transform_3(%arg0: i32) -> (i32, i32) {
    %c0_i32 = arith.constant 0 : i32
    %c0_i32_0 = arith.constant 0 : i32
    %c0_i32_1 = arith.constant 0 : i32
    return %c0_i32, %c0_i32_0 : i32, i32
  }
  func.func @transform_4(%arg0: i32) -> (i32, i32) {
    %c0_i32 = arith.constant 0 : i32
    %c0_i32_0 = arith.constant 0 : i32
    %c0_i32_1 = arith.constant 0 : i32
    return %c0_i32, %c0_i32_0 : i32, i32
  }
  func.func @transform_5(%arg0: i32) -> (i32, i32) {
    %c0_i32 = arith.constant 0 : i32
    %c0_i32_0 = arith.constant 0 : i32
    return %arg0, %c0_i32 : i32, i32
  }
}

</mosaic_0001>

<llo_original>
// kernel: tpu_custom_call.1
$region0: #{tpu_custom_call.1}
  #allocation0 [shape = 'u32[]', space=smem, size = 0x4, offset = 0x4, fixed_abs, tag = 'smem constant byte address 0x4 - core index']
  #allocation1 [shape = 'u32[144,128]{1,0:T(1,128)}', space=vmem, size = 0x12000, scoped, tag = 'internal scratch']
  %s0 = inlined_call_operand.vmem [shape: f32[24,4], index: 0, kind: input, shape index: {}]
  %s1 = inlined_call_operand.vmem [shape: f32[4,32], index: 1, kind: input, shape index: {}]
  %s2 = inlined_call_operand.vmem [shape: f32[1,32], index: 2, kind: input, shape index: {}]
  %s3 = inlined_call_operand.vmem [shape: f32[1,32], index: 3, kind: input, shape index: {}]
  %s4 = inlined_call_operand.vmem [shape: f32[1,32], index: 4, kind: input, shape index: {}]
  %s5 = inlined_call_operand.hbm [shape: f32[24,32], index: 5, kind: output, shape index: {}]
  %s6 = sld [smem:[#allocation0]]
  $region30: #{tpu_custom_call.1} parent=0
    _
  %s8 = ssub.s32 1, %s6
  %s9 = scalar_select 0, %s8, %s6
  $region1: #{tpu_custom_call.1} parent=0
    #allocation2 [shape = 'u8[12288]{0}', space=vmem, size = 0x3000, scoped, tag = 'output window, operand 0, single buffered']
    #allocation3 [shape = 's32[1]{0}', space=sflag, size = 0x4, scoped, tag = 'scoped memory for tpu_custom_call.1']
    %10 = vsyncpa [#allocation3], 0
    // Predicated region
    $region2: #{tpu_custom_call.1} parent=1 // pred_check
      _
    $region3: #{tpu_custom_call.1} parent=1 // pred_check_branch
      %12 = sbr.rel (0) target = $region5
    $region4: #{tpu_custom_call.1} parent=1 // pred_region
      _
    $region5: #{tpu_custom_call.1} parent=1 // pred_fallthru
      _
    // Predicated region
    $region6: #{tpu_custom_call.1} parent=1 // pred_check
      _
    $region7: #{tpu_custom_call.1} parent=1 // pred_check_branch
      %14 = sbr.rel (0) target = $region9
    $region8: #{tpu_custom_call.1} parent=1 // pred_region
      _
    $region9: #{tpu_custom_call.1} parent=1 // pred_fallthru
      _
    // Predicated region
    $region10: #{tpu_custom_call.1} parent=1 // pred_check
      _
    $region11: #{tpu_custom_call.1} parent=1 // pred_check_branch
      %16 = sbr.rel (0) target = $region13
    $region12: #{tpu_custom_call.1} parent=1 // pred_region
      _
    $region13: #{tpu_custom_call.1} parent=1 // pred_fallthru
      _
    // Predicated region
    $region14: #{tpu_custom_call.1} parent=1 // pred_check
      _
    $region15: #{tpu_custom_call.1} parent=1 // pred_check_branch
      %18 = sbr.rel (0) target = $region17
    $region16: #{tpu_custom_call.1} parent=1 // pred_region
      _
    $region17: #{tpu_custom_call.1} parent=1 // pred_fallthru
      _
    // Predicated region
    $region18: #{tpu_custom_call.1} parent=1 // pred_check
      _
    $region19: #{tpu_custom_call.1} parent=1 // pred_check_branch
      %20 = sbr.rel (0) target = $region21
    $region20: #{tpu_custom_call.1} parent=1 // pred_region
      _
    $region21: #{tpu_custom_call.1} parent=1 // pred_fallthru
      _
    %s21 = smul.u32 0, 24
    %v22 = vlaneseq
    %v23 = vshrl.u32 %v22, 7
    %v24 = vadd.s32 %v23, 8
    %v25 = vadd.s32 %v23, 16
    %v26 = vstv %s21
    %v27 = vadd.s32 %v26, %v23
    %v28 = vadd.s32 %v26, %v24
    %v29 = vadd.s32 %v26, %v25
    %vm30 = vcmp.lt.s32.totalorder %v27, 0
    %v31 = vsub.s32 0, %v27
    %v32 = vsel %vm30, %v31, %v27
    %v33 = vmul.u32.u64.compose %v32, 2863311531
    %v34 = vextract.low.u32 %v33
    %v35 = vextract.high.u32 %v33
    %v36 = vshrl.u32 %v35, 3
    %v37 = vmul.u32 %v36, 12
    %v38 = vsub.s32 %v32, %v37
    %v39 = vsub.s32 0, %v38
    %v40 = vsel %vm30, %v39, %v38
    %vm41 = vcmp.lt.s32.totalorder %v28, 0
    %v42 = vsub.s32 0, %v28
    %v43 = vsel %vm41, %v42, %v28
    %v44 = vmul.u32.u64.compose %v43, 2863311531
    %v45 = vextract.low.u32 %v44
    %v46 = vextract.high.u32 %v44
    %v47 = vshrl.u32 %v46, 3
    %v48 = vmul.u32 %v47, 12
    %v49 = vsub.s32 %v43, %v48
    %v50 = vsub.s32 0, %v49
    %v51 = vsel %vm41, %v50, %v49
    %vm52 = vcmp.lt.s32.totalorder %v29, 0
    %v53 = vsub.s32 0, %v29
    %v54 = vsel %vm52, %v53, %v29
    %v55 = vmul.u32.u64.compose %v54, 2863311531
    %v56 = vextract.low.u32 %v55
    %v57 = vextract.high.u32 %v55
    %v58 = vshrl.u32 %v57, 3
    %v59 = vmul.u32 %v58, 12
    %v60 = vsub.s32 %v54, %v59
    %v61 = vsub.s32 0, %v60
    %v62 = vsel %vm52, %v61, %v60
    %vm63 = vcmp.ne.s32.totalorder %v40, 0
    %vm64 = vcmp.ne.s32.totalorder %v51, 0
    %vm65 = vcmp.ne.s32.totalorder %v62, 0
    %vm66 = vcmp.lt.s32.totalorder %v40, 0
    %vm67 = vcmp.lt.s32.totalorder %v51, 0
    %vm68 = vcmp.lt.s32.totalorder %v62, 0
    %vm69 = vmand %vm66, %vm63
    %vm70 = vmand %vm67, %vm64
    %vm71 = vmand %vm68, %vm65
    %v72 = vadd.s32 %v40, 12
    %v73 = vadd.s32 %v51, 12
    %v74 = vadd.s32 %v62, 12
    %v75 = vsel %vm69, %v72, %v40
    %v76 = vsel %vm70, %v73, %v51
    %v77 = vsel %vm71, %v74, %v62
    %v78 = vld [vmem:[%s2] sm:$0x1]
    %vm79 = vcmp.eq.s32.totalorder %v75, 0
    %vm80 = vcmp.eq.s32.totalorder %v76, 0
    %vm81 = vcmp.eq.s32.totalorder %v77, 0
    %v82 = vld [vmem:[%s3] sm:$0x1]
    %v83 = vsel %vm79, 1, 0
    %v84 = vsel %vm80, 1, 0
    %v85 = vsel %vm81, 1, 0
    %vm86 = vcmp.eq.s32.totalorder %v83, 1
    %vm87 = vcmp.eq.s32.totalorder %v84, 1
    %vm88 = vcmp.eq.s32.totalorder %v85, 1
    %v90 = vlaneseq
    %v91 = vshrl.u32 %v90, 7
    %v92 = vsub.s32 0, %v91
    %v93 = vrot.slane %v82, %v92
    %v95 = vsel %vm86, %v93, 0.0
    %v96 = vsel %vm87, %v93, 0.0
    %v97 = vsel %vm88, %v93, 0.0
    %v99 = vlaneseq
    %v100 = vshrl.u32 %v99, 7
    %v101 = vsub.s32 0, %v100
    %v102 = vrot.slane %v78, %v101
    %v104 = vadd.f32 %v102, %v95
    %v105 = vadd.f32 %v102, %v96
    %v106 = vadd.f32 %v102, %v97
    %vm107 = vcmp.eq.s32.totalorder %v75, 11
    %vm108 = vcmp.eq.s32.totalorder %v76, 11
    %vm109 = vcmp.eq.s32.totalorder %v77, 11
    %v110 = vld [vmem:[%s4] sm:$0x1]
    %v111 = vsel %vm107, 1, 0
    %v112 = vsel %vm108, 1, 0
    %v113 = vsel %vm109, 1, 0
    %vm114 = vcmp.eq.s32.totalorder %v111, 1
    %vm115 = vcmp.eq.s32.totalorder %v112, 1
    %vm116 = vcmp.eq.s32.totalorder %v113, 1
    %v118 = vlaneseq
    %v119 = vshrl.u32 %v118, 7
    %v120 = vsub.s32 0, %v119
    %v121 = vrot.slane %v110, %v120
    %v123 = vsel %vm114, %v121, 0.0
    %v124 = vsel %vm115, %v121, 0.0
    %v125 = vsel %vm116, %v121, 0.0
    %v126 = vadd.f32 %v104, %v123
    %v127 = vadd.f32 %v105, %v124
    %v128 = vadd.f32 %v106, %v125
    %v129 = vld [vmem:[%s0] sm:$0xff]
    %v130 = vld [vmem:[%s0 + $0x8] sm:$0xff]
    %v131 = vld [vmem:[%s0 + $0x10] sm:$0xff]
    %v132 = vld [vmem:[%s1] sm:$0xf]
    %vm133 = vcmask 31744
    %v135 = vsel %vm133, %v129, 0
    %v138 = vsel %vm133, %v130, 0
    %v141 = vsel %vm133, %v131, 0
    %vm143 = vcmask 1043456
    %v145 = vsel %vm143, %v132, 0
    %147 = vmatprep.subr.mxu0 0.0
    %148 = vmatpush1.msra.mxu0 %v145
    %149 = vmatprep.subr.mxu0 0.0
    %150 = vmatpush1.msra.mxu0 0.0
    %151 = vmatprep.subr.mxu0 0.0
    %152 = vmatpush1.msra.mxu0 0.0
    %153 = vmatprep.subr.mxu0 0.0
    %154 = vmatpush1.msra.mxu0 0.0
    %155 = vmatprep.subr.mxu0 0.0
    %156 = vmatpush1.msra.mxu0 0.0
    %157 = vmatprep.subr.mxu0 0.0
    %158 = vmatpush1.msra.mxu0 0.0
    %159 = vmatprep.subr.mxu0 0.0
    %160 = vmatpush1.msra.mxu0 0.0
    %161 = vmatprep.subr.mxu0 0.0
    %162 = vmatpush1.msra.mxu0 0.0
    %163 = vmatprep.subr.mxu0 0.0
    %164 = vmatpush1.msra.mxu0 0.0
    %165 = vmatprep.subr.mxu0 0.0
    %166 = vmatpush1.msra.mxu0 0.0
    %167 = vmatprep.subr.mxu0 0.0
    %168 = vmatpush1.msra.mxu0 0.0
    %169 = vmatprep.subr.mxu0 0.0
    %170 = vmatpush1.msra.mxu0 0.0
    %171 = vmatprep.subr.mxu0 0.0
    %172 = vmatpush1.msra.mxu0 0.0
    %173 = vmatprep.subr.mxu0 0.0
    %174 = vmatpush1.msra.mxu0 0.0
    %175 = vmatprep.subr.mxu0 0.0
    %176 = vmatpush1.msra.mxu0 0.0
    %177 = vmatprep.subr.mxu0 0.0
    %178 = vmatpush1.msra.mxu0 0.0
    %179 = vmatprep.subr.mxu0 0.0
    %180 = vmatpush1.msra.mxu0 0.0
    %181 = vmatprep.subr.mxu0 0.0
    %182 = vmatpush1.msra.mxu0 0.0
    %183 = vmatprep.subr.mxu0 0.0
    %184 = vmatpush1.msra.mxu0 0.0
    %185 = vmatprep.subr.mxu0 0.0
    %186 = vmatpush1.msra.mxu0 0.0
    %187 = vmatprep.subr.mxu0 0.0
    %188 = vmatpush1.msra.mxu0 0.0
    %189 = vmatprep.subr.mxu0 0.0
    %190 = vmatpush1.msra.mxu0 0.0
    %191 = vmatprep.subr.mxu0 0.0
    %192 = vmatpush1.msra.mxu0 0.0
    %193 = vmatprep.subr.mxu0 0.0
    %194 = vmatpush1.msra.mxu0 0.0
    %195 = vmatprep.subr.mxu0 0.0
    %196 = vmatpush1.msra.mxu0 0.0
    %197 = vmatprep.subr.mxu0 0.0
    %198 = vmatpush1.msra.mxu0 0.0
    %199 = vmatprep.subr.mxu0 0.0
    %200 = vmatpush1.msra.mxu0 0.0
    %201 = vmatprep.subr.mxu0 0.0
    %202 = vmatpush1.msra.mxu0 0.0
    %203 = vmatprep.subr.mxu0 0.0
    %204 = vmatpush1.msra.mxu0 0.0
    %205 = vmatprep.subr.mxu0 0.0
    %206 = vmatpush1.msra.mxu0 0.0
    %207 = vmatprep.subr.mxu0 0.0
    %208 = vmatpush1.msra.mxu0 0.0
    %209 = vmatprep.subr.mxu0 0.0
    %210 = vmatpush1.msra.mxu0 0.0
    %211 = vmatprep.mubr.f32.mxu0 0.0
    %212 = vmatmul.mubr.f32.gmra.mrb[0].mxu0 %v135
    %v213 = vpop.f32.mrb[0].mxu0
    %v214 = vadd.f32 %v126, %v213
    %v215 = vpop.f32.mrb[0].mxu0
    %216 = vmatprep.mubr.f32.mxu0 0.0
    %217 = vmatmul.mubr.f32.gmra.mrb[0].mxu0 %v138
    %v218 = vpop.f32.mrb[0].mxu0
    %v219 = vadd.f32 %v127, %v218
    %v220 = vpop.f32.mrb[0].mxu0
    %221 = vmatprep.mubr.f32.mxu0 0.0
    %222 = vmatmul.mubr.f32.gmra.mrb[0].mxu0 %v141
    %v223 = vpop.f32.mrb[0].mxu0
    %v224 = vadd.f32 %v128, %v223
    %v225 = vpop.f32.mrb[0].mxu0
    %226 = vdwg.mxu0
    %vm227 = vcmask 261120
    %228 = vst.msk [vmem:[#allocation2] sm:$0xff] %vm227, %v214
    %229 = vst.msk [vmem:[#allocation2 + $0x8] sm:$0xff] %vm227, %v219
    %230 = vst.msk [vmem:[#allocation2 + $0x10] sm:$0xff] %vm227, %v224
    // Predicated region
    $region22: #{tpu_custom_call.1} parent=1 // pred_check
      _
    $region23: #{tpu_custom_call.1} parent=1 // pred_check_branch
      %232 = sbr.rel (0) target = $region25
    $region24: #{tpu_custom_call.1} parent=1 // pred_region
      %s234 = ssub.s32 384, 384
      %235 = vsyncadd [#allocation3], %s234
      %s236 = sshll.u32 [#allocation2], 4
      %s237 = int_to_ptr.vmem [resolvable:$true] %s236
      %242 = dma.vmem_to_hbm [thread:$0]  %s237, 384, %s5, [#allocation3], 128, 128, 8
    $region25: #{tpu_custom_call.1} parent=1 // pred_fallthru
      _
    // Predicated region
    $region26: #{tpu_custom_call.1} parent=1 // pred_check
      _
    $region27: #{tpu_custom_call.1} parent=1 // pred_check_branch
      %244 = sbr.rel (0) target = $region29
    $region28: #{tpu_custom_call.1} parent=1 // pred_region
      %245 = dma.done [#allocation3], 384
    $region29: #{tpu_custom_call.1} parent=1 // pred_fallthru
      _
    %246 = vsyncpa [#allocation3], 1

</llo_original>
